<compile_context>
chip_gen: v6e
topology: v6e:2x2x1
jax: 0.10.0
libtpu: 0.0.40
codegen_flags: <defaults>
</compile_context>

<pallas_src>
import jax
import jax.numpy as jnp
from jax import lax
from jax.experimental import pallas as pl
from jax.experimental.pallas import tpu as pltpu


# ---------------------------------------------------------------------------
# Generation-aware VMEM sizing helpers
# ---------------------------------------------------------------------------
def _tpu_vmem_capacity_bytes():
    """Physical VMEM per TensorCore; conservative fallback if the query fails."""
    try:
        fn = getattr(pltpu, "get_tpu_info", None)
        if fn is not None:
            cap = getattr(fn(), "vmem_capacity_bytes", None)
            if cap:
                return int(cap)
    except Exception:
        pass
    return 64 << 20  # v7x per-TC size; safe lower bound for v5e/v6e too


def _vmem_limit_bytes(working_bytes, cap):
    """Scoped-VMEM limit: enough for the double-buffered working set, never > 3/4 phys."""
    return int(min(cap * 3 // 4, max(32 << 20, int(working_bytes) + (8 << 20))))


# ---------------------------------------------------------------------------
# Kernel 1: tiled global average pool  (adaptive_avg_pool2d(x, 1).view(N, C))
# ---------------------------------------------------------------------------
def _pick_spatial_tile(hw, bytes_per_lane, budget_bytes):
    """Largest lane tile (multiple of 128 or full HW) within the per-block budget.

    Prefers a tile that divides HW so no remainder mask is ever needed.
    NOTE: if C is very large this clamps toward 128 lanes and the per-row DMA segment
    shrinks; in that regime one should tile C as well (not needed for LoFTR shapes).
    """
    if hw <= 128:
        return hw
    max_lanes = max((budget_bytes // max(bytes_per_lane, 1)) // 128 * 128, 128)
    if hw <= max_lanes:
        return hw                                   # full extent is always legal
    for lanes in range(max_lanes, 127, -128):       # prefer an exact divisor of HW
        if hw % lanes == 0:
            return lanes
    return max_lanes                                # remainder masked on last step only


def _make_pool_kernel(hw, thw):
    inv_hw = 1.0 / float(hw)
    needs_mask = (hw % thw) != 0

    def kernel(x_ref, z_ref, acc_ref):
        t = pl.program_id(1)
        last = pl.num_programs(1) - 1

        @pl.when(t == 0)
        def _init():
            acc_ref[...] = jnp.zeros_like(acc_ref)

        def partial_sum(mask_tail):
            xv = x_ref[...].astype(jnp.float32)
            if mask_tail:
                pos = t * thw + lax.broadcasted_iota(jnp.int32, xv.shape, 2)
                xv = jnp.where(pos < hw, xv, 0.0)
            return jnp.sum(xv, axis=-1)

        if needs_mask:
            # Mask costs ~3-4x the VPU work of the sum -> only pay it on the last step.
            @pl.when(t < last)
            def _body():
                acc_ref[...] += partial_sum(False)

            @pl.when(t == last)
            def _tail():
                acc_ref[...] += partial_sum(True)
        else:
            acc_ref[...] += partial_sum(False)

        @pl.when(t == last)
        def _finalize():
            z_ref[...] = acc_ref[...] * inv_hw

    return kernel


def global_avg_pool(x3):
    """x3: (N, C, HW) -> (N, C) f32 spatial means."""
    N, C, HW = x3.shape
    itemsize = jnp.dtype(x3.dtype).itemsize
    cap = _tpu_vmem_capacity_bytes()
    budget = min(16 << 20, cap // 8)        # 16 MiB blocks on v5e/v6e, 8 MiB on v7x

    # Use both TensorCores on v7x when the channel halves stay lane-aligned.
    c_split = 2 if (C % 256 == 0) else 1
    Cb = C // c_split
    thw = _pick_spatial_tile(HW, N * Cb * itemsize, budget)
    num_tiles = (HW + thw - 1) // thw
    block_bytes = N * Cb * thw * itemsize

    grid_spec = pltpu.PrefetchScalarGridSpec(
        num_scalar_prefetch=0,
        grid=(c_split, num_tiles),
        in_specs=[pl.BlockSpec((N, Cb, thw), lambda c, t: (0, c, t))],
        out_specs=pl.BlockSpec((N, Cb), lambda c, t: (0, c)),
        scratch_shapes=[pltpu.VMEM((N, Cb), jnp.float32)],
    )
    cost = pl.CostEstimate(
        flops=N * C * HW,
        transcendentals=0,
        bytes_accessed=N * C * HW * itemsize + N * C * 4,
    )
    return pl.pallas_call(
        _make_pool_kernel(HW, thw),
        grid_spec=grid_spec,
        out_shape=jax.ShapeDtypeStruct((N, C), jnp.float32),
        compiler_params=pltpu.CompilerParams(
            dimension_semantics=("parallel", "arbitrary"),
            vmem_limit_bytes=_vmem_limit_bytes(2 * block_bytes, cap)),
        cost_estimate=cost,
    )(x3)


# ---------------------------------------------------------------------------
# Kernel 2: fc1 -> ReLU -> fc2 -> sigmoid on the pooled vector
# ---------------------------------------------------------------------------
def _head_kernel(z_ref, w1_ref, b1_ref, w2_ref, b2_ref, s_ref):
    h = jnp.dot(z_ref[...], w1_ref[...], preferred_element_type=jnp.float32) + b1_ref[...]
    h = jnp.maximum(h, 0.0)
    s = jnp.dot(h, w2_ref[...], preferred_element_type=jnp.float32) + b2_ref[...]
    s_ref[...] = jax.nn.sigmoid(s)


def score_head(z, w1t, b1, w2t, b2):
    N, C = z.shape
    Ch = w1t.shape[1]
    grid_spec = pltpu.PrefetchScalarGridSpec(
        num_scalar_prefetch=0,
        grid=(1,),
        in_specs=[
            pl.BlockSpec((N, C), lambda i: (0, 0)),
            pl.BlockSpec((C, Ch), lambda i: (0, 0)),
            pl.BlockSpec((1, Ch), lambda i: (0, 0)),
            pl.BlockSpec((Ch, C), lambda i: (0, 0)),
            pl.BlockSpec((1, C), lambda i: (0, 0)),
        ],
        out_specs=pl.BlockSpec((N, C), lambda i: (0, 0)),
    )
    cost = pl.CostEstimate(
        flops=4 * N * C * max(Ch, 1),
        transcendentals=N * C,
        bytes_accessed=4 * (N * C * 2 + 2 * C * Ch + C + Ch),
    )
    return pl.pallas_call(
        _head_kernel,
        grid_spec=grid_spec,
        out_shape=jax.ShapeDtypeStruct((N, C), jnp.float32),
        compiler_params=pltpu.CompilerParams(dimension_semantics=("arbitrary",)),
        cost_estimate=cost,
    )(z, w1t, b1.reshape(1, Ch), w2t, b2.reshape(1, C))


# ---------------------------------------------------------------------------
# Kernel 3a: small-feature gather via one-hot x MXU matmul (whole (C, HW) in VMEM)
# ---------------------------------------------------------------------------
def _gather_onehot_kernel(oh_ref, x_ref, o_ref):
    sel = jnp.dot(oh_ref[0], x_ref[0], preferred_element_type=jnp.float32)
    o_ref[...] = sel[None].astype(o_ref.dtype)


def _gather_onehot(x3, indices, cap):
    N, C, HW = x3.shape
    n_out = indices.shape[1]
    itemsize = jnp.dtype(x3.dtype).itemsize
    onehot = (indices[:, :, None] ==
              jnp.arange(C, dtype=indices.dtype)[None, None, :]).astype(x3.dtype)
    grid_spec = pltpu.PrefetchScalarGridSpec(
        num_scalar_prefetch=0,
        grid=(N,),
        in_specs=[
            pl.BlockSpec((1, n_out, C), lambda b: (b, 0, 0)),
            pl.BlockSpec((1, C, HW), lambda b: (b, 0, 0)),
        ],
        out_specs=pl.BlockSpec((1, n_out, HW), lambda b: (b, 0, 0)),
    )
    working = 2 * itemsize * (n_out * C + C * HW + n_out * HW)
    cost = pl.CostEstimate(
        flops=2 * N * n_out * C * HW,
        transcendentals=0,
        bytes_accessed=N * itemsize * (n_out * C + C * HW + n_out * HW),
    )
    return pl.pallas_call(
        _gather_onehot_kernel,
        grid_spec=grid_spec,
        out_shape=jax.ShapeDtypeStruct((N, n_out, HW), x3.dtype),
        compiler_params=pltpu.CompilerParams(
            dimension_semantics=("parallel",),
            vmem_limit_bytes=_vmem_limit_bytes(working, cap)),
        cost_estimate=cost,
    )(onehot, x3)


# ---------------------------------------------------------------------------
# Kernel 3b: large-feature gather via manual double-buffered HBM DMAs
# ---------------------------------------------------------------------------
def _pick_channels_per_step(n_ch, hw_bytes, max_k=64, budget=16 << 20):
    """Return (K, n_pad): channels fetched per grid step and padded channel count."""
    k_cap = max(8, min(max_k, budget // max(4 * hw_bytes, 1)))
    if n_ch <= k_cap:
        return n_ch, n_ch                       # single block; full-dim block is legal
    best = 0
    for k in range(8, k_cap + 1, 8):            # prefer an 8-aligned exact divisor
        if n_ch % k == 0:
            best = k
    if best:
        return best, n_ch
    # No aligned divisor: pad the gathered channel count (clamped duplicate fetches,
    # sliced off afterwards).  Minimize padding, prefer larger K on ties.
    cands = [(-(-n_ch // k) * k, -k, k) for k in range(8, k_cap + 1, 8)]
    n_pad, _, k = min(cands)
    return k, n_pad


def _make_gather_dma_kernel(K, C, n_valid):
    def kernel(idx_ref, x_hbm, o_ref, buf, sem):
        # grid = (N, n_pad // K); idx_ref: (N, n_ch) int32 in SMEM; x_hbm: (N*C, HW) HBM.
        b = pl.program_id(0)
        cblk = pl.program_id(1)
        n_b = pl.num_programs(0)
        n_cblk = pl.num_programs(1)
        step = b * n_cblk + cblk                 # linearized sequential step
        slot = step % 2

        def start_fetch(bb, cb, sl):
            for k in range(K):                   # static unroll: K DMA descriptors
                col = jnp.minimum(cb * K + k, n_valid - 1)   # clamp padded tail
                ch = idx_ref[bb, col]
                pltpu.make_async_copy(
                    x_hbm.at[bb * C + ch], buf.at[sl, k], sem.at[sl, k]).start()

        @pl.when(step == 0)                      # prime the pipeline once (not per batch)
        def _prime():
            start_fetch(0, 0, 0)

        @pl.when(step + 1 < n_b * n_cblk)        # prefetch next step, across batch rows
        def _prefetch():
            nxt = step + 1
            start_fetch(nxt // n_cblk, nxt % n_cblk, 1 - slot)

        for k in range(K):                       # wait current slot
            pltpu.make_async_copy(x_hbm.at[0], buf.at[slot, k], sem.at[slot, k]).wait()

        o_ref[...] = buf[slot][None]             # (1, K, HW) lane-dense store

    return kernel


def _gather_dma(x_rows, indices, C, cap):
    """x_rows: (N*C, HW); indices: (N, n_ch) int32 -> (N, n_ch, HW)."""
    N, n_ch = indices.shape
    HW = x_rows.shape[1]
    itemsize = jnp.dtype(x_rows.dtype).itemsize
    K, n_pad = _pick_channels_per_step(n_ch, HW * itemsize)
    n_cblk = n_pad // K

    grid_spec = pltpu.PrefetchScalarGridSpec(
        num_scalar_prefetch=1,
        grid=(N, n_cblk),
        in_specs=[pl.BlockSpec(memory_space=pl.ANY)],     # x stays in HBM; manual DMA
        out_specs=pl.BlockSpec((1, K, HW), lambda b, c, idx: (b, c, 0)),
        scratch_shapes=[
            pltpu.VMEM((2, K, HW), x_rows.dtype),         # double-buffered channel tiles
            pltpu.SemaphoreType.DMA((2, K)),
        ],
    )
    working = 4 * K * HW * itemsize                        # buf (2x) + out double-buffer
    cost = pl.CostEstimate(
        flops=0,
        transcendentals=0,
        bytes_accessed=2 * N * n_pad * HW * itemsize,
    )
    out = pl.pallas_call(
        _make_gather_dma_kernel(K, C, n_ch),
        grid_spec=grid_spec,
        out_shape=jax.ShapeDtypeStruct((N, n_pad, HW), x_rows.dtype),
        # NOTE: both axes must stay sequential ("arbitrary") — the double-buffer slots
        # and the cross-batch prefetch assume linearized step order on one core.
        compiler_params=pltpu.CompilerParams(
            dimension_semantics=("arbitrary", "arbitrary"),
            vmem_limit_bytes=_vmem_limit_bytes(working, cap)),
        cost_estimate=cost,
    )(indices, x_rows)
    if n_pad != n_ch:
        out = out[:, :n_ch]                               # drop clamped duplicate rows
    return out


def gather_channels(x3, indices, *, force_dma=False):
    """x3: (N, C, HW); indices: (N, n_ch) -> (N, n_ch, HW)."""
    N, C, HW = x3.shape
    n_ch = indices.shape[1]
    if n_ch == 0:
        return jnp.zeros((N, 0, HW), x3.dtype)
    itemsize = jnp.dtype(x3.dtype).itemsize
    cap = _tpu_vmem_capacity_bytes()
    indices = indices.astype(jnp.int32)
    small = (C * HW * itemsize) <= (4 << 20)
    if small and not force_dma:
        return _gather_onehot(x3, indices, cap)
    return _gather_dma(x3.reshape(N * C, HW), indices, C, cap)


# ---------------------------------------------------------------------------
# Channelenhance / LoFTRWithChannelenhance wrappers (glue)
# ---------------------------------------------------------------------------
def _init_linear(key, in_f, out_f):
    # PyTorch nn.Linear default init: U(-1/sqrt(fan_in), 1/sqrt(fan_in)) for W and b.
    kw, kb = jax.random.split(key)
    bound = 1.0 / float(in_f) ** 0.5
    w = jax.random.uniform(kw, (out_f, in_f), jnp.float32, -bound, bound)
    b = jax.random.uniform(kb, (out_f,), jnp.float32, -bound, bound)
    return w, b


def make_channel_enhance_params(key, C):
    # The PyTorch module builds fc1/fc2 fresh inside forward(); emulate with a key.
    k1, k2 = jax.random.split(key)
    w1, b1 = _init_linear(k1, C, C // 2)
    w2, b2 = _init_linear(k2, C // 2, C)
    # Pre-transpose so the kernel computes z @ W^T + b as z @ w_t + b.
    return (w1.T, b1, w2.T, b2)


def channel_enhance(x, params, reduction_ratio, *, force_dma_gather=False,
                    return_scores=False):
    N, C, H, W = x.shape
    HW = H * W
    w1t, b1, w2t, b2 = params
    x3 = x.reshape(N, C, HW)                              # free reshape, native dtype
    z = global_avg_pool(x3)                               # Pallas: (N, C) f32 means
    scores = score_head(z, w1t, b1, w2t, b2)              # Pallas: fc1/ReLU/fc2/sigmoid
    indices = jnp.argsort(-scores, axis=1).astype(jnp.int32)
    rc = int(reduction_ratio * C)
    sel = gather_channels(x3, indices[:, :rc], force_dma=force_dma_gather)
    rem = gather_channels(x3, indices[:, rc:], force_dma=force_dma_gather)
    sel = sel.reshape(N, rc, H, W)
    rem = rem.reshape(N, C - rc, H, W)
    if return_scores:
        return sel, rem, scores
    return sel, rem


def loftr_with_channel_enhance(feat_c0, feat_c1, reduction_ratio, key,
                               *, force_dma_gather=False):
    # In PyTorch each forward() of Channelenhance builds new Linear layers, so
    # feat_c0 and feat_c1 see independently initialized fc1/fc2.
    C = feat_c0.shape[1]
    k0, k1 = jax.random.split(key)
    params0 = make_channel_enhance_params(k0, C)
    params1 = make_channel_enhance_params(k1, C)
    f0_sel, f0_rem = channel_enhance(feat_c0, params0, reduction_ratio,
                                     force_dma_gather=force_dma_gather)
    f1_sel, f1_rem = channel_enhance(feat_c1, params1, reduction_ratio,
                                     force_dma_gather=force_dma_gather)
    return f0_sel, f0_rem, f1_sel, f1_rem


# ---------------------------------------------------------------------------
# Self-test
# ---------------------------------------------------------------------------
if __name__ == "__main__":
    key = jax.random.PRNGKey(0)
    k_a, k_b, k_params, k_big = jax.random.split(key, 4)

    def ref_scores(x, params):
        w1t, b1, w2t, b2 = params
        z = jnp.mean(x.astype(jnp.float32), axis=(2, 3))
        return jax.nn.sigmoid(jnp.maximum(z @ w1t + b1, 0.0) @ w2t + b2)

    def check(x, params, r, force_dma):
        n, c, h, w = x.shape
        sel, rem, scores = channel_enhance(x, params, r, force_dma_gather=force_dma,
                                           return_scores=True)
        sel, rem, scores = jax.block_until_ready((sel, rem, scores))
        s_ref = ref_scores(x, params)
        assert jnp.allclose(scores, s_ref, atol=2e-5, rtol=1e-5), \
            float(jnp.max(jnp.abs(scores - s_ref)))
        # Gather check uses the kernel's own score ordering (decouples near-tie flips).
        idx = jnp.argsort(-scores, axis=1)
        g = jnp.take_along_axis(x, idx[:, :, None, None], axis=1)
        rcc = int(r * c)
        assert sel.shape == (n, rcc, h, w) and rem.shape == (n, c - rcc, h, w)
        assert jnp.allclose(sel, g[:, :rcc], atol=1e-5, rtol=1e-5)
        assert jnp.allclose(rem, g[:, rcc:], atol=1e-5, rtol=1e-5)

    # ---- Module-faithful small demo (matches the PyTorch forward shapes) ----
    N, C, H, W = 2, 4, 16, 16
    reduction_ratio = 0.5
    feat_c0 = jax.random.normal(k_a, (N, C, H, W), dtype=jnp.float32)
    feat_c1 = jax.random.normal(k_b, (N, C, H, W), dtype=jnp.float32)

    outs = loftr_with_channel_enhance(feat_c0, feat_c1, reduction_ratio, k_params)
    outs = jax.block_until_ready(outs)
    rc = int(reduction_ratio * C)
    assert outs[0].shape == (N, rc, H, W)
    assert outs[1].shape == (N, C - rc, H, W)
    assert outs[2].shape == (N, rc, H, W)
    assert outs[3].shape == (N, C - rc, H, W)

    k0, k1 = jax.random.split(k_params)
    check(feat_c0, make_channel_enhance_params(k0, C), reduction_ratio, force_dma=False)
    check(feat_c1, make_channel_enhance_params(k1, C), reduction_ratio, force_dma=False)

    # ---- Larger test: exercises the megacore pooling split (C=256), the manual
    # double-buffered DMA gather with cross-batch prefetch, and the padded
    # (non-multiple-of-8) channel-count path (rc = int(0.3*256) = 76).
    N2, C2, H2, W2 = 2, 256, 16, 16
    kx, kp = jax.random.split(k_big)
    x2 = jax.random.normal(kx, (N2, C2, H2, W2), dtype=jnp.float32)
    p2 = make_channel_enhance_params(kp, C2)
    check(x2, p2, 0.3, force_dma=True)

    print("KERNEL_OK")
</pallas_src>

<mosaic_0001>
module attributes {stable_mosaic.version = 11 : i64} {
  func.func @kernel(%arg0: i32, %arg1: i32, %arg2: memref<2x4x256xf32, #tpu.memory_space<vmem>>, %arg3: memref<2x4xf32, #tpu.memory_space<vmem>>, %arg4: memref<2x4xf32, #tpu.memory_space<vmem>>) attributes {dimension_semantics = [#tpu.dimension_semantics<parallel>, #tpu.dimension_semantics<arbitrary>], iteration_bounds = array<i64: 1, 1>, scalar_prefetch = 0 : i64, scratch_operands = 1 : i64, tpu.core_type = #tpu.core_type<tc>, window_params = [{transform_indices = @transform_0, window_bounds = array<i64: 2, 4, 256>}, {transform_indices = @transform_1, window_bounds = array<i64: 2, 4>}]} {
    %c0_i32 = arith.constant 0 : i32
    %0 = arith.cmpi eq, %arg1, %c0_i32 : i32
    %1 = arith.extui %0 : i1 to i32
    %c0_i32_0 = arith.constant 0 : i32
    %2 = arith.cmpi ne, %1, %c0_i32_0 : i32
    scf.if %2 {
      %cst_9 = arith.constant 0.000000e+00 : f32
      %11 = vector.broadcast %cst_9 : f32 to vector<2x4xf32>
      %c0_10 = arith.constant 0 : index
      %c0_11 = arith.constant 0 : index
      %12 = vector.load %arg4[%c0_10, %c0_11] : memref<2x4xf32, #tpu.memory_space<vmem>>, vector<2x4xf32>
      tpu.vector_store %arg4[%c0_10, %c0_11], %11 {strides = array<i32>} : memref<2x4xf32, #tpu.memory_space<vmem>>, vector<2x4xf32>,
    } else {
    }
    %c0 = arith.constant 0 : index
    %c0_1 = arith.constant 0 : index
    %3 = vector.load %arg4[%c0, %c0_1] : memref<2x4xf32, #tpu.memory_space<vmem>>, vector<2x4xf32>
    %c0_2 = arith.constant 0 : index
    %c0_3 = arith.constant 0 : index
    %c0_4 = arith.constant 0 : index
    %4 = vector.load %arg2[%c0_2, %c0_3, %c0_4] : memref<2x4x256xf32, #tpu.memory_space<vmem>>, vector<2x4x256xf32>
    %cst = arith.constant dense<0.000000e+00> : vector<2x4xf32>
    %5 = vector.multi_reduction <add>, %4, %cst [2] : vector<2x4x256xf32> to vector<2x4xf32>
    %6 = arith.addf %3, %5 : vector<2x4xf32>
    %c0_5 = arith.constant 0 : index
    %c0_6 = arith.constant 0 : index
    %7 = vector.load %arg4[%c0_5, %c0_6] : memref<2x4xf32, #tpu.memory_space<vmem>>, vector<2x4xf32>
    tpu.vector_store %arg4[%c0_5, %c0_6], %6 {strides = array<i32>} : memref<2x4xf32, #tpu.memory_space<vmem>>, vector<2x4xf32>,
    %c0_i32_7 = arith.constant 0 : i32
    %8 = arith.cmpi eq, %arg1, %c0_i32_7 : i32
    %9 = arith.extui %8 : i1 to i32
    %c0_i32_8 = arith.constant 0 : i32
    %10 = arith.cmpi ne, %9, %c0_i32_8 : i32
    scf.if %10 {
      %c0_9 = arith.constant 0 : index
      %c0_10 = arith.constant 0 : index
      %11 = vector.load %arg4[%c0_9, %c0_10] : memref<2x4xf32, #tpu.memory_space<vmem>>, vector<2x4xf32>
      %cst_11 = arith.constant 3.906250e-03 : f32
      %12 = vector.broadcast %cst_11 : f32 to vector<2x4xf32>
      %13 = arith.mulf %11, %12 : vector<2x4xf32>
      %c0_12 = arith.constant 0 : index
      %c0_13 = arith.constant 0 : index
      %14 = vector.load %arg3[%c0_12, %c0_13] : memref<2x4xf32, #tpu.memory_space<vmem>>, vector<2x4xf32>
      tpu.vector_store %arg3[%c0_12, %c0_13], %13 {strides = array<i32>} : memref<2x4xf32, #tpu.memory_space<vmem>>, vector<2x4xf32>,
    } else {
    }
    return
  }
  func.func @transform_0(%arg0: i32, %arg1: i32) -> (i32, i32, i32) {
    %c0_i32 = arith.constant 0 : i32
    %c0_i32_0 = arith.constant 0 : i32
    return %c0_i32, %arg0, %arg1 : i32, i32, i32
  }
  func.func @transform_1(%arg0: i32, %arg1: i32) -> (i32, i32) {
    %c0_i32 = arith.constant 0 : i32
    %c0_i32_0 = arith.constant 0 : i32
    return %c0_i32, %arg0 : i32, i32
  }
}

</mosaic_0001>

<llo_original>
// kernel: tpu_custom_call.1
$region0: #{tpu_custom_call.1}
  #allocation0 [shape = 'u32[]', space=smem, size = 0x4, offset = 0x4, fixed_abs, tag = 'smem constant byte address 0x4 - core index']
  #allocation1 [shape = 'u32[144,128]{1,0:T(1,128)}', space=vmem, size = 0x12000, scoped, tag = 'internal scratch']
  #allocation2 [shape = 'f32[2,4]{1,0:T(2,128)}', space=vmem, size = 0x400, scoped, tag = 'scratch operand']
  %s0 = inlined_call_operand.hbm [shape: f32[2,4,256], index: 0, kind: input, shape index: {}]
  %s1 = inlined_call_operand.hbm [shape: f32[2,4], index: 1, kind: output, shape index: {}]
  %s2 = sld [smem:[#allocation0]]
  $region26: #{tpu_custom_call.1} parent=0
    _
  %s4 = ssub.s32 1, %s2
  %s5 = scalar_select 0, %s4, %s2
  $region1: #{tpu_custom_call.1} parent=0
    #allocation3 [shape = 'u8[8192]{0}', space=vmem, size = 0x2000, scoped, tag = 'input window, operand 0, single buffered']
    #allocation4 [shape = 's32[1]{0}', space=sflag, size = 0x4, scoped, tag = 'scoped memory for tpu_custom_call.1']
    #allocation5 [shape = 's32[1]{0}', space=sflag, size = 0x4, scoped, tag = 'scoped memory for tpu_custom_call.1']
    #allocation6 [shape = 'u8[1024]{0}', space=vmem, size = 0x400, scoped, tag = 'output window, operand 0, single buffered']
    %6 = vsyncpa [#allocation4], 0
    %7 = vsyncpa [#allocation5], 0
    // Predicated region
    $region2: #{tpu_custom_call.1} parent=1 // pred_check
      _
    $region3: #{tpu_custom_call.1} parent=1 // pred_check_branch
      %9 = sbr.rel (0) target = $region5
    $region4: #{tpu_custom_call.1} parent=1 // pred_region
      %s11 = ssub.s32 256, 256
      %12 = vsyncadd [#allocation4], %s11
      %s13 = sshll.u32 [#allocation3], 4
      %s14 = int_to_ptr.vmem [resolvable:$true] %s13
      %19 = dma.hbm_to_vmem [thread:$0]  %s0, 256, %s14, [#allocation4], 128, 128, 8
    $region5: #{tpu_custom_call.1} parent=1 // pred_fallthru
      _
    // Predicated region
    $region6: #{tpu_custom_call.1} parent=1 // pred_check
      _
    $region7: #{tpu_custom_call.1} parent=1 // pred_check_branch
      %21 = sbr.rel (0) target = $region9
    $region8: #{tpu_custom_call.1} parent=1 // pred_region
      %22 = dma.done [#allocation4], 256
    $region9: #{tpu_custom_call.1} parent=1 // pred_fallthru
      _
    %p23 = scmp.eq.s32.totalorder 0, 0
    // Predicated region
    $region10: #{tpu_custom_call.1} parent=1 // pred_check
      %p24 = pneg %p23
    $region11: #{tpu_custom_call.1} parent=1 // pred_check_branch
      %26 = sbr.rel (%p24) target = $region13
    $region12: #{tpu_custom_call.1} parent=1 // pred_region
      %vm27 = vcmask 25600
      %28 = vst.msk [vmem:[#allocation2] sm:$0x3] %vm27, 0.0
    $region13: #{tpu_custom_call.1} parent=1 // pred_fallthru
      _
    %v29 = vld [vmem:[#allocation2] sm:$0x3]
    %v30 = vld [vmem:[#allocation3] sm:$0xff]
    %v31 = vld [vmem:[#allocation3 + $0x8] sm:$0xff]
    %v34 = vcombine.high %v30, %v30
    %v35 = vcombine.high %v31, %v31
    %vm38 = vcmask 1043456
    %v39 = vsel %vm38, %v30, 0.0
    %v40 = vsel %vm38, %v34, 0.0
    %v41 = vadd.f32 %v39, %v40
    %42 = vadd.xlane.f32.xlu0 %v41
    %v43 = vpop.xlane.xlu0 %42
    %v44 = vsel %vm38, %v31, 0.0
    %v45 = vsel %vm38, %v35, 0.0
    %v46 = vadd.f32 %v44, %v45
    %47 = vadd.xlane.f32.xlu0 %v46
    %v48 = vpop.xlane.xlu0 %47
    %v51 = vlaneseq
    %v52 = vand.u32 %v51, 127
    %v53 = vlaneseq
    %v54 = vshrl.u32 %v53, 7
    %v55 = vsub.s32 %v52, %v54
    %v56 = vrot.slane %v43, %v55
    %v57 = vlaneseq
    %v58 = vshrl.u32 %v57, 7
    %v59 = vsub.s32 %v52, %v58
    %v60 = vrot.slane %v48, %v59
    %vm61 = vcmask 1041409
    %v62 = vsel %vm61, %v60, %v56
    %v64 = vadd.f32 %v29, %v62
    %vm65 = vcmask 25600
    %66 = vst.msk [vmem:[#allocation2] sm:$0x3] %vm65, %v64
    // Predicated region
    $region14: #{tpu_custom_call.1} parent=1 // pred_check
      %p67 = pneg %p23
    $region15: #{tpu_custom_call.1} parent=1 // pred_check_branch
      %69 = sbr.rel (%p67) target = $region17
    $region16: #{tpu_custom_call.1} parent=1 // pred_region
      %v70 = vld [vmem:[#allocation2] sm:$0x3]
      %v71 = vmul.f32 %v70, 0.00390625
      %72 = vst.msk [vmem:[#allocation6] sm:$0x3] %vm65, %v71
    $region17: #{tpu_custom_call.1} parent=1 // pred_fallthru
      _
    // Predicated region
    $region18: #{tpu_custom_call.1} parent=1 // pred_check
      _
    $region19: #{tpu_custom_call.1} parent=1 // pred_check_branch
      %74 = sbr.rel (0) target = $region21
    $region20: #{tpu_custom_call.1} parent=1 // pred_region
      %s76 = ssub.s32 32, 32
      %77 = vsyncadd [#allocation5], %s76
      %s79 = sshll.u32 [#allocation6], 4
      %s80 = int_to_ptr.vmem [resolvable:$true] %s79
      %82 = dma.vmem_to_hbm [thread:$0]  %s80, 32, %s1, [#allocation5]
    $region21: #{tpu_custom_call.1} parent=1 // pred_fallthru
      _
    // Predicated region
    $region22: #{tpu_custom_call.1} parent=1 // pred_check
      _
    $region23: #{tpu_custom_call.1} parent=1 // pred_check_branch
      %84 = sbr.rel (0) target = $region25
    $region24: #{tpu_custom_call.1} parent=1 // pred_region
      %85 = dma.done [#allocation5], 32
    $region25: #{tpu_custom_call.1} parent=1 // pred_fallthru
      _
    %86 = vsyncpa [#allocation4], 1
    %87 = vsyncpa [#allocation5], 1

</llo_original>
